<compile_context>
chip_gen: v7x
topology: tpu7x:2x2x1
jax: 0.10.0
libtpu: 0.0.40
codegen_flags: <defaults>
</compile_context>

<pallas_src>
import functools

import jax
import jax.numpy as jnp
from jax.experimental import pallas as pl
from jax.experimental.pallas import tpu as pltpu

INPUT_SIZE = 32
HID1 = 256
HID2 = 128
HEAD_HID = 64
SCENARIOS = 5
NH = SCENARIOS * HEAD_HID        # 320 : packed head hidden width
CAT_W = 384                      # NH + SCENARIOS padded to a lane multiple (3*128)
OUT_W = 16                       # packed output slab width (1 + 5 + 5 + 5 pad)
BN_EPS = 1e-5
MAX_TM = 2048                    # kernel VMEM at tm=2048 is ~12-15 MiB: safe everywhere


# ----------------------------------------------------------------------------
# Kernel
# ----------------------------------------------------------------------------
def _il_kernel(x_ref, w1_ref, b1_ref, w2_ref, b2_ref,
               wcat_ref, bcat_ref, wh2_ref, bh2_ref, out_ref):
    cdt = w1_ref.dtype                      # matmul operand dtype (bf16)

    # In-kernel cast: x arrives f32 from HBM, bf16 only for the MXU operands.
    x = x_ref[...].astype(cdt)                                         # [tm, 32]

    # Linear(32,256) -> ReLU              (BN1 folded into w2/b2 below)
    h1 = jnp.dot(x, w1_ref[...], preferred_element_type=jnp.float32) + b1_ref[...]
    h1 = jnp.maximum(h1, 0.0)

    # Linear(256,128) [BN1 folded] -> ReLU  (BN2 folded into wcat/bcat below)
    h2 = jnp.dot(h1.astype(cdt), w2_ref[...],
                 preferred_element_type=jnp.float32) + b2_ref[...]
    feats = jnp.maximum(h2, 0.0)                                       # [tm, 128] f32

    # Fused: 5 head first-layers (cols 0..319) + scenario_weights linear
    # (cols 320..324), BN2 folded, padded to 384 lanes.
    cat = jnp.dot(feats.astype(cdt), wcat_ref[...],
                  preferred_element_type=jnp.float32) + bcat_ref[...]  # [tm, 384]
    hh = jnp.maximum(cat[:, :NH], 0.0)                                 # [tm, 320]
    logits = cat[:, NH:NH + SCENARIOS]                                 # [tm, 5]

    # Block-diagonal second head layer -> one prediction column per scenario.
    # TODO(synk): on v5e/v7x this could move off the MXU (segmented roll+add
    # lane reduction) if a bundle dump shows it serializing on the MXU push
    # slot; kept on the MXU here for lowering robustness.
    preds = jnp.dot(hh.astype(cdt), wh2_ref[...],
                    preferred_element_type=jnp.float32) + bh2_ref[...]  # [tm, 5]

    # Stable softmax over the 5 scenarios (exact divide -> probs sum to 1).
    m = jnp.max(logits, axis=-1, keepdims=True)
    e = jnp.exp(logits - m)
    probs = e / jnp.sum(e, axis=-1, keepdims=True)

    eil = jnp.sum(preds * probs, axis=-1, keepdims=True)               # [tm, 1]

    # Narrow packed output row (16 f32 lanes = 64 B/row), single store.
    pad = jnp.zeros((eil.shape[0], OUT_W - 1 - 2 * SCENARIOS), jnp.float32)
    out_ref[...] = jnp.concatenate([eil, preds, probs, pad], axis=-1)


# ----------------------------------------------------------------------------
# Parameters (torch-free, deterministic)
# ----------------------------------------------------------------------------
def make_raw_params(key, input_size=INPUT_SIZE):
    """Unfolded f32 parameters matching the PyTorch module layout."""
    ks = jax.random.split(key, 6)
    f32 = jnp.float32

    def lin(k, fan_in, fan_out):
        kw, kb = jax.random.split(k)
        bound = 1.0 / jnp.sqrt(fan_in)
        w = jax.random.uniform(kw, (fan_in, fan_out), f32, -bound, bound)
        b = jax.random.uniform(kb, (1, fan_out), f32, -bound, bound)
        return w, b

    def bn(k, n):
        kg, kb, km, kv = jax.random.split(k, 4)
        gamma = 1.0 + 0.1 * jax.random.normal(kg, (1, n), f32)
        beta = 0.1 * jax.random.normal(kb, (1, n), f32)
        r_mean = 0.05 * jax.random.normal(km, (1, n), f32)
        r_var = 1.0 + 0.1 * jax.random.uniform(kv, (1, n), f32)
        return gamma, beta, r_mean, r_var

    p = {}
    p["w1"], p["b1"] = lin(ks[0], input_size, HID1)
    p["bn1"] = bn(ks[1], HID1)
    p["w2"], p["b2"] = lin(ks[2], HID1, HID2)
    p["bn2"] = bn(ks[3], HID2)
    head_keys = jax.random.split(ks[4], SCENARIOS)
    heads = []
    for j in range(SCENARIOS):
        k1, k2 = jax.random.split(head_keys[j])
        wa, ba = lin(k1, HID2, HEAD_HID)   # Linear(128, 64)
        wb, bb = lin(k2, HEAD_HID, 1)      # Linear(64, 1)
        heads.append((wa, ba, wb, bb))
    p["heads"] = heads
    p["ww"], p["bw"] = lin(ks[5], HID2, SCENARIOS)
    return p


def _bn_affine(bn):
    gamma, beta, r_mean, r_var = bn
    s = gamma / jnp.sqrt(r_var + BN_EPS)
    t = beta - r_mean * s
    return s, t


def pack_params(raw, mm_dtype=jnp.bfloat16):
    """Fold BN into adjacent linears, fuse/pack heads + scenario_weights,
    cast matmul weights to bf16 (biases stay f32)."""
    f32 = jnp.float32
    s1, t1 = _bn_affine(raw["bn1"])
    s2, t2 = _bn_affine(raw["bn2"])

    # Fold BN1 into the second linear:  relu(h1)*s1 + t1  ->  w2', b2'.
    w2f = raw["w2"] * s1.reshape(HID1, 1)
    b2f = raw["b2"] + t1 @ raw["w2"]

    # Pack head first layers + scenario_weights linear into one [128, 384]
    # matrix (pad lanes), then fold BN2 into it.
    wh1 = jnp.concatenate([h[0] for h in raw["heads"]], axis=1)          # [128, 320]
    bh1 = jnp.concatenate([h[1] for h in raw["heads"]], axis=1)          # [1, 320]
    wcat_unf = jnp.concatenate(
        [wh1, raw["ww"], jnp.zeros((HID2, CAT_W - NH - SCENARIOS), f32)], axis=1)
    bcat_unf = jnp.concatenate(
        [bh1, raw["bw"], jnp.zeros((1, CAT_W - NH - SCENARIOS), f32)], axis=1)
    wcatf = wcat_unf * s2.reshape(HID2, 1)
    bcatf = bcat_unf + t2 @ wcat_unf

    # Block-diagonal second head layer: [320, 5].
    wh2 = jnp.zeros((NH, SCENARIOS), f32)
    bh2 = jnp.zeros((1, SCENARIOS), f32)
    for j, (_, _, wb, bb) in enumerate(raw["heads"]):
        wh2 = wh2.at[j * HEAD_HID:(j + 1) * HEAD_HID, j].set(wb[:, 0])
        bh2 = bh2.at[0, j].set(bb[0, 0])

    return {
        "w1": raw["w1"].astype(mm_dtype), "b1": raw["b1"],
        "w2": w2f.astype(mm_dtype), "b2": b2f,
        "wcat": wcatf.astype(mm_dtype), "bcat": bcatf,
        "wh2": wh2.astype(mm_dtype), "bh2": bh2,
    }


# ----------------------------------------------------------------------------
# Wrapper
# ----------------------------------------------------------------------------
def _round_up(n, m):
    return ((n + m - 1) // m) * m


def _choose_tm(batch, max_tm=MAX_TM):
    """Batch tile: big enough to amortize per-grid-step overhead, but capped so
    the grid keeps >= 2 steps for large batches (v7x has 2 TensorCores and the
    'parallel' grid axis is how work shards across them)."""
    if batch <= 256:
        return _round_up(max(batch, 1), 8)
    return int(min(max_tm, _round_up(-(-batch // 2), 256)))


@functools.partial(jax.jit, static_argnames=("tm",))
def _forward_impl(x, packed, *, tm):
    B, D = x.shape
    b_pad = _round_up(B, tm)
    if b_pad != B:
        x = jnp.pad(x, ((0, b_pad - B), (0, 0)))   # f32 pad only; cast happens in-kernel

    p = packed
    args = (x, p["w1"], p["b1"], p["w2"], p["b2"],
            p["wcat"], p["bcat"], p["wh2"], p["bh2"])

    in_specs = ([pl.BlockSpec((tm, D), lambda i: (i, 0))] +
                [pl.BlockSpec(a.shape, lambda i: (0, 0)) for a in args[1:]])
    out_spec = pl.BlockSpec((tm, OUT_W), lambda i: (i, 0))

    out = pl.pallas_call(
        _il_kernel,
        grid=(b_pad // tm,),
        in_specs=in_specs,
        out_specs=out_spec,
        out_shape=jax.ShapeDtypeStruct((b_pad, OUT_W), jnp.float32),
        compiler_params=pltpu.CompilerParams(
            dimension_semantics=("parallel",)),
    )(*args)

    # Narrow (64 B/row) slab -> cheap slices.
    return {
        "expected_impermanent_loss": out[:B, 0:1],
        "scenario_predictions": out[:B, 1:1 + SCENARIOS],
        "scenario_probabilities": out[:B, 1 + SCENARIOS:1 + 2 * SCENARIOS],
    }


def forecaster_forward(x, packed, tm=None):
    if tm is None:
        tm = _choose_tm(x.shape[0])
    return _forward_impl(x, packed, tm=int(tm))


# ----------------------------------------------------------------------------
# References
# ----------------------------------------------------------------------------
def reference_forward_raw(x, raw):
    """Pure f32 eval of the original module (BN eval mode, dropout identity)."""
    s1, t1 = _bn_affine(raw["bn1"])
    s2, t2 = _bn_affine(raw["bn2"])
    h1 = jnp.maximum(x @ raw["w1"] + raw["b1"], 0.0) * s1 + t1
    feats = jnp.maximum(h1 @ raw["w2"] + raw["b2"], 0.0) * s2 + t2
    preds = jnp.concatenate(
        [jnp.maximum(feats @ wa + ba, 0.0) @ wb + bb
         for (wa, ba, wb, bb) in raw["heads"]], axis=1)
    probs = jax.nn.softmax(feats @ raw["ww"] + raw["bw"], axis=1)
    eil = jnp.sum(preds * probs, axis=1, keepdims=True)
    return eil, preds, probs


def reference_forward_packed(x, p):
    """Same folded params and bf16/f32 mixed precision as the kernel."""
    cdt = p["w1"].dtype
    xc = x.astype(cdt)
    h1 = jnp.maximum(
        jnp.dot(xc, p["w1"], preferred_element_type=jnp.float32) + p["b1"], 0.0)
    feats = jnp.maximum(
        jnp.dot(h1.astype(cdt), p["w2"], preferred_element_type=jnp.float32) + p["b2"], 0.0)
    cat = jnp.dot(feats.astype(cdt), p["wcat"],
                  preferred_element_type=jnp.float32) + p["bcat"]
    hh = jnp.maximum(cat[:, :NH], 0.0)
    logits = cat[:, NH:NH + SCENARIOS]
    preds = jnp.dot(hh.astype(cdt), p["wh2"],
                    preferred_element_type=jnp.float32) + p["bh2"]
    probs = jax.nn.softmax(logits, axis=1)
    eil = jnp.sum(preds * probs, axis=1, keepdims=True)
    return eil, preds, probs


# ----------------------------------------------------------------------------
# Test
# ----------------------------------------------------------------------------
if __name__ == "__main__":
    key = jax.random.PRNGKey(0)
    k_params, k_x1, k_x2 = jax.random.split(key, 3)

    raw = make_raw_params(k_params)
    packed = pack_params(raw)

    # Small batch consistent with the module spec (single tight tile).
    B_small = 8
    x_small = jax.random.normal(k_x1, (B_small, INPUT_SIZE), jnp.float32)
    out_small = forecaster_forward(x_small, packed)
    jax.block_until_ready(out_small)

    # Larger ragged batch: auto tile -> 2 "parallel" grid steps + pad path.
    B_big = 600
    x_big = jax.random.normal(k_x2, (B_big, INPUT_SIZE), jnp.float32)
    out_big = forecaster_forward(x_big, packed)
    jax.block_until_ready(out_big)

    for x, out in ((x_small, out_small), (x_big, out_big)):
        B = x.shape[0]
        assert out["expected_impermanent_loss"].shape == (B, 1)
        assert out["scenario_predictions"].shape == (B, SCENARIOS)
        assert out["scenario_probabilities"].shape == (B, SCENARIOS)

        # Probabilities are exactly normalized (exact divide in the kernel).
        assert jnp.allclose(out["scenario_probabilities"].sum(axis=1), 1.0, atol=1e-5)

        # Tight check vs the matched-precision (bf16 matmul) reference.
        eil_p, preds_p, probs_p = reference_forward_packed(x, packed)
        assert jnp.allclose(out["expected_impermanent_loss"], eil_p, atol=2e-3, rtol=2e-3)
        assert jnp.allclose(out["scenario_predictions"], preds_p, atol=2e-3, rtol=2e-3)
        assert jnp.allclose(out["scenario_probabilities"], probs_p, atol=2e-3, rtol=2e-3)

        # Looser check vs the unfolded f32 module reference
        # (validates BN folding / head packing / scenario-weight fusion).
        eil_r, preds_r, probs_r = reference_forward_raw(x, raw)
        assert jnp.allclose(out["expected_impermanent_loss"], eil_r, atol=5e-2)
        assert jnp.allclose(out["scenario_predictions"], preds_r, atol=5e-2)
        assert jnp.allclose(out["scenario_probabilities"], probs_r, atol=5e-2)

    print("KERNEL_OK")
</pallas_src>

<mosaic_0001>
module attributes {stable_mosaic.version = 11 : i64} {
  func.func @_il_kernel(%arg0: i32, %arg1: memref<8x32xf32, #tpu.memory_space<vmem>>, %arg2: memref<32x256xbf16, #tpu.memory_space<vmem>>, %arg3: memref<1x256xf32, #tpu.memory_space<vmem>>, %arg4: memref<256x128xbf16, #tpu.memory_space<vmem>>, %arg5: memref<1x128xf32, #tpu.memory_space<vmem>>, %arg6: memref<128x384xbf16, #tpu.memory_space<vmem>>, %arg7: memref<1x384xf32, #tpu.memory_space<vmem>>, %arg8: memref<320x5xbf16, #tpu.memory_space<vmem>>, %arg9: memref<1x5xf32, #tpu.memory_space<vmem>>, %arg10: memref<8x16xf32, #tpu.memory_space<vmem>>) attributes {dimension_semantics = [#tpu.dimension_semantics<parallel>], iteration_bounds = array<i64: 1>, scalar_prefetch = 0 : i64, scratch_operands = 0 : i64, tpu.core_type = #tpu.core_type<tc>, window_params = [{transform_indices = @transform_0, window_bounds = array<i64: 8, 32>}, {pipeline_mode = #tpu.pipeline_mode<synchronous>, transform_indices = @transform_1, window_bounds = array<i64: 32, 256>}, {pipeline_mode = #tpu.pipeline_mode<synchronous>, transform_indices = @transform_2, window_bounds = array<i64: 1, 256>}, {pipeline_mode = #tpu.pipeline_mode<synchronous>, transform_indices = @transform_3, window_bounds = array<i64: 256, 128>}, {pipeline_mode = #tpu.pipeline_mode<synchronous>, transform_indices = @transform_4, window_bounds = array<i64: 1, 128>}, {pipeline_mode = #tpu.pipeline_mode<synchronous>, transform_indices = @transform_5, window_bounds = array<i64: 128, 384>}, {pipeline_mode = #tpu.pipeline_mode<synchronous>, transform_indices = @transform_6, window_bounds = array<i64: 1, 384>}, {pipeline_mode = #tpu.pipeline_mode<synchronous>, transform_indices = @transform_7, window_bounds = array<i64: 320, 5>}, {pipeline_mode = #tpu.pipeline_mode<synchronous>, transform_indices = @transform_8, window_bounds = array<i64: 1, 5>}, {transform_indices = @transform_9, window_bounds = array<i64: 8, 16>}]} {
    %c0 = arith.constant 0 : index
    %c0_0 = arith.constant 0 : index
    %0 = vector.load %arg1[%c0, %c0_0] : memref<8x32xf32, #tpu.memory_space<vmem>>, vector<8x32xf32>
    %1 = arith.truncf %0 : vector<8x32xf32> to vector<8x32xbf16>
    %c0_1 = arith.constant 0 : index
    %c0_2 = arith.constant 0 : index
    %2 = vector.load %arg2[%c0_1, %c0_2] : memref<32x256xbf16, #tpu.memory_space<vmem>>, vector<32x256xbf16>
    %cst = arith.constant dense<0.000000e+00> : vector<8x256xf32>
    %3 = tpu.matmul %1, %2, %cst {dimension_numbers = #tpu.dot_dimension_numbers<[1], [0], [0], [1], [0, 0, 1, 1], [], []>} : vector<8x32xbf16>, vector<32x256xbf16>, vector<8x256xf32> -> vector<8x256xf32>
    %c0_3 = arith.constant 0 : index
    %c0_4 = arith.constant 0 : index
    %4 = vector.load %arg3[%c0_3, %c0_4] : memref<1x256xf32, #tpu.memory_space<vmem>>, vector<1x256xf32>
    %5 = vector.broadcast %4 : vector<1x256xf32> to vector<8x256xf32>
    %6 = arith.addf %3, %5 : vector<8x256xf32>
    %cst_5 = arith.constant 0.000000e+00 : f32
    %7 = vector.broadcast %cst_5 : f32 to vector<8x256xf32>
    %8 = arith.maximumf %6, %7 : vector<8x256xf32>
    %9 = arith.truncf %8 : vector<8x256xf32> to vector<8x256xbf16>
    %c0_6 = arith.constant 0 : index
    %c0_7 = arith.constant 0 : index
    %10 = vector.load %arg4[%c0_6, %c0_7] : memref<256x128xbf16, #tpu.memory_space<vmem>>, vector<256x128xbf16>
    %cst_8 = arith.constant dense<0.000000e+00> : vector<8x128xf32>
    %11 = tpu.matmul %9, %10, %cst_8 {dimension_numbers = #tpu.dot_dimension_numbers<[1], [0], [0], [1], [0, 0, 1, 1], [], []>} : vector<8x256xbf16>, vector<256x128xbf16>, vector<8x128xf32> -> vector<8x128xf32>
    %c0_9 = arith.constant 0 : index
    %c0_10 = arith.constant 0 : index
    %12 = vector.load %arg5[%c0_9, %c0_10] : memref<1x128xf32, #tpu.memory_space<vmem>>, vector<1x128xf32>
    %13 = vector.broadcast %12 : vector<1x128xf32> to vector<8x128xf32>
    %14 = arith.addf %11, %13 : vector<8x128xf32>
    %cst_11 = arith.constant 0.000000e+00 : f32
    %15 = vector.broadcast %cst_11 : f32 to vector<8x128xf32>
    %16 = arith.maximumf %14, %15 : vector<8x128xf32>
    %17 = arith.truncf %16 : vector<8x128xf32> to vector<8x128xbf16>
    %c0_12 = arith.constant 0 : index
    %c0_13 = arith.constant 0 : index
    %18 = vector.load %arg6[%c0_12, %c0_13] : memref<128x384xbf16, #tpu.memory_space<vmem>>, vector<128x384xbf16>
    %cst_14 = arith.constant dense<0.000000e+00> : vector<8x384xf32>
    %19 = tpu.matmul %17, %18, %cst_14 {dimension_numbers = #tpu.dot_dimension_numbers<[1], [0], [0], [1], [0, 0, 1, 1], [], []>} : vector<8x128xbf16>, vector<128x384xbf16>, vector<8x384xf32> -> vector<8x384xf32>
    %c0_15 = arith.constant 0 : index
    %c0_16 = arith.constant 0 : index
    %20 = vector.load %arg7[%c0_15, %c0_16] : memref<1x384xf32, #tpu.memory_space<vmem>>, vector<1x384xf32>
    %21 = vector.broadcast %20 : vector<1x384xf32> to vector<8x384xf32>
    %22 = arith.addf %19, %21 : vector<8x384xf32>
    %23 = vector.extract_strided_slice %22 {offsets = [0, 0], sizes = [8, 320], strides = [1, 1]} : vector<8x384xf32> to vector<8x320xf32>
    %cst_17 = arith.constant 0.000000e+00 : f32
    %24 = vector.broadcast %cst_17 : f32 to vector<8x320xf32>
    %25 = arith.maximumf %23, %24 : vector<8x320xf32>
    %26 = vector.extract_strided_slice %22 {offsets = [0, 320], sizes = [8, 5], strides = [1, 1]} : vector<8x384xf32> to vector<8x5xf32>
    %27 = arith.truncf %25 : vector<8x320xf32> to vector<8x320xbf16>
    %c0_18 = arith.constant 0 : index
    %c0_19 = arith.constant 0 : index
    %28 = vector.load %arg8[%c0_18, %c0_19] : memref<320x5xbf16, #tpu.memory_space<vmem>>, vector<320x5xbf16>
    %cst_20 = arith.constant dense<0.000000e+00> : vector<8x5xf32>
    %29 = tpu.matmul %27, %28, %cst_20 {dimension_numbers = #tpu.dot_dimension_numbers<[1], [0], [0], [1], [0, 0, 1, 1], [], []>} : vector<8x320xbf16>, vector<320x5xbf16>, vector<8x5xf32> -> vector<8x5xf32>
    %c0_21 = arith.constant 0 : index
    %c0_22 = arith.constant 0 : index
    %30 = vector.load %arg9[%c0_21, %c0_22] : memref<1x5xf32, #tpu.memory_space<vmem>>, vector<1x5xf32>
    %31 = vector.broadcast %30 : vector<1x5xf32> to vector<8x5xf32>
    %32 = arith.addf %29, %31 : vector<8x5xf32>
    %cst_23 = arith.constant dense<0xFF800000> : vector<8xf32>
    %33 = vector.multi_reduction <maximumf>, %26, %cst_23 [1] : vector<8x5xf32> to vector<8xf32>
    %34 = vector.shape_cast %33 : vector<8xf32> to vector<8x1xf32>
    %35 = vector.broadcast %34 : vector<8x1xf32> to vector<8x5xf32>
    %36 = arith.subf %26, %35 : vector<8x5xf32>
    %37 = math.exp %36 : vector<8x5xf32>
    %cst_24 = arith.constant dense<0.000000e+00> : vector<8xf32>
    %38 = vector.multi_reduction <add>, %37, %cst_24 [1] : vector<8x5xf32> to vector<8xf32>
    %39 = vector.shape_cast %38 : vector<8xf32> to vector<8x1xf32>
    %40 = vector.broadcast %39 : vector<8x1xf32> to vector<8x5xf32>
    %41 = arith.divf %37, %40 : vector<8x5xf32>
    %42 = arith.mulf %32, %41 : vector<8x5xf32>
    %cst_25 = arith.constant dense<0.000000e+00> : vector<8xf32>
    %43 = vector.multi_reduction <add>, %42, %cst_25 [1] : vector<8x5xf32> to vector<8xf32>
    %44 = vector.shape_cast %43 : vector<8xf32> to vector<8x1xf32>
    %cst_26 = arith.constant 0.000000e+00 : f32
    %45 = vector.broadcast %cst_26 : f32 to vector<8x5xf32>
    %46 = tpu.concatenate %44, %32, %41, %45 in 1 : vector<8x1xf32>, vector<8x5xf32>, vector<8x5xf32>, vector<8x5xf32> -> vector<8x16xf32>
    %c0_27 = arith.constant 0 : index
    %c0_28 = arith.constant 0 : index
    %47 = vector.load %arg10[%c0_27, %c0_28] : memref<8x16xf32, #tpu.memory_space<vmem>>, vector<8x16xf32>
    tpu.vector_store %arg10[%c0_27, %c0_28], %46 {strides = array<i32>} : memref<8x16xf32, #tpu.memory_space<vmem>>, vector<8x16xf32>,
    return
  }
  func.func @transform_0(%arg0: i32) -> (i32, i32) {
    %c0_i32 = arith.constant 0 : i32
    %c0_i32_0 = arith.constant 0 : i32
    return %arg0, %c0_i32 : i32, i32
  }
  func.func @transform_1(%arg0: i32) -> (i32, i32) {
    %c0_i32 = arith.constant 0 : i32
    %c0_i32_0 = arith.constant 0 : i32
    %c0_i32_1 = arith.constant 0 : i32
    return %c0_i32, %c0_i32_0 : i32, i32
  }
  func.func @transform_2(%arg0: i32) -> (i32, i32) {
    %c0_i32 = arith.constant 0 : i32
    %c0_i32_0 = arith.constant 0 : i32
    %c0_i32_1 = arith.constant 0 : i32
    return %c0_i32, %c0_i32_0 : i32, i32
  }
  func.func @transform_3(%arg0: i32) -> (i32, i32) {
    %c0_i32 = arith.constant 0 : i32
    %c0_i32_0 = arith.constant 0 : i32
    %c0_i32_1 = arith.constant 0 : i32
    return %c0_i32, %c0_i32_0 : i32, i32
  }
  func.func @transform_4(%arg0: i32) -> (i32, i32) {
    %c0_i32 = arith.constant 0 : i32
    %c0_i32_0 = arith.constant 0 : i32
    %c0_i32_1 = arith.constant 0 : i32
    return %c0_i32, %c0_i32_0 : i32, i32
  }
  func.func @transform_5(%arg0: i32) -> (i32, i32) {
    %c0_i32 = arith.constant 0 : i32
    %c0_i32_0 = arith.constant 0 : i32
    %c0_i32_1 = arith.constant 0 : i32
    return %c0_i32, %c0_i32_0 : i32, i32
  }
  func.func @transform_6(%arg0: i32) -> (i32, i32) {
    %c0_i32 = arith.constant 0 : i32
    %c0_i32_0 = arith.constant 0 : i32
    %c0_i32_1 = arith.constant 0 : i32
    return %c0_i32, %c0_i32_0 : i32, i32
  }
  func.func @transform_7(%arg0: i32) -> (i32, i32) {
    %c0_i32 = arith.constant 0 : i32
    %c0_i32_0 = arith.constant 0 : i32
    %c0_i32_1 = arith.constant 0 : i32
    return %c0_i32, %c0_i32_0 : i32, i32
  }
  func.func @transform_8(%arg0: i32) -> (i32, i32) {
    %c0_i32 = arith.constant 0 : i32
    %c0_i32_0 = arith.constant 0 : i32
    %c0_i32_1 = arith.constant 0 : i32
    return %c0_i32, %c0_i32_0 : i32, i32
  }
  func.func @transform_9(%arg0: i32) -> (i32, i32) {
    %c0_i32 = arith.constant 0 : i32
    %c0_i32_0 = arith.constant 0 : i32
    return %arg0, %c0_i32 : i32, i32
  }
}

</mosaic_0001>

<llo_original>
// kernel: _forward_impl.1
$region0: #{_forward_impl.1}
  #allocation0 [shape = 'u32[]', space=smem, size = 0x4, offset = 0x4, fixed_abs, tag = 'smem constant byte address 0x4 - core index']
  #allocation1 [shape = 'u32[144,128]{1,0:T(1,128)}', space=vmem, size = 0x12000, scoped, tag = 'internal scratch']
  %s0 = inlined_call_operand.hbm [shape: f32[8,32], index: 0, kind: input, shape index: {}]
  %s1 = inlined_call_operand.hbm [shape: bf16[32,256], index: 1, kind: input, shape index: {}]
  %s2 = inlined_call_operand.vmem [shape: f32[1,256], index: 2, kind: input, shape index: {}]
  %s3 = inlined_call_operand.hbm [shape: bf16[256,128], index: 3, kind: input, shape index: {}]
  %s4 = inlined_call_operand.vmem [shape: f32[1,128], index: 4, kind: input, shape index: {}]
  %s5 = inlined_call_operand.vmem [shape: bf16[128,384], index: 5, kind: input, shape index: {}]
  %s6 = inlined_call_operand.vmem [shape: f32[1,384], index: 6, kind: input, shape index: {}]
  %s7 = inlined_call_operand.vmem [shape: bf16[320,5], index: 7, kind: input, shape index: {}]
  %s8 = inlined_call_operand.hbm [shape: f32[1,5], index: 8, kind: input, shape index: {}]
  %s9 = inlined_call_operand.vmem [shape: f32[8,16], index: 9, kind: output, shape index: {}]
  %s10 = sld [smem:[#allocation0]]
  $region62: #{_forward_impl.1} parent=0
    _
  %s12 = ssub.s32 1, %s10
  %s13 = scalar_select 0, %s12, %s10
  $region1: #{_forward_impl.1} parent=0
    #allocation2 [shape = 'u8[4096]{0}', space=vmem, size = 0x1000, scoped, tag = 'input window, operand 0, single buffered']
    #allocation3 [shape = 's32[1]{0}', space=sflag, size = 0x4, scoped, tag = 'scoped memory for _forward_impl.1']
    #allocation4 [shape = 'u8[16384]{0}', space=vmem, size = 0x4000, scoped, tag = 'input window, operand 1, single buffered']
    #allocation5 [shape = 's32[1]{0}', space=sflag, size = 0x4, scoped, tag = 'scoped memory for _forward_impl.1']
    #allocation6 [shape = 'u8[65536]{0}', space=vmem, size = 0x10000, scoped, tag = 'input window, operand 3, single buffered']
    #allocation7 [shape = 'u8[512]{0}', space=vmem, size = 0x400, scoped, tag = 'input window, operand 8, single buffered']
    #allocation8 [shape = 's32[1]{0}', space=sflag, size = 0x4, scoped, tag = 'scoped memory for _forward_impl.1']
    %14 = vsyncpa [#allocation3], 0
    %15 = vsyncpa [#allocation5], 0
    %16 = vsyncpa [#allocation8], 0
    // Predicated region
    $region2: #{_forward_impl.1} parent=1 // pred_check
      _
    $region3: #{_forward_impl.1} parent=1 // pred_check_branch
      %18 = sbr.rel (0) target = $region5
    $region4: #{_forward_impl.1} parent=1 // pred_region
      %s20 = ssub.s32 128, 128
      %21 = vsyncadd [#allocation3], %s20
      %s23 = sshll.u32 [#allocation2], 4
      %s24 = int_to_ptr.vmem [resolvable:$true] %s23
      %26 = dma.hbm_to_vmem [thread:$0]  %s0, 128, %s24, [#allocation3]
    $region5: #{_forward_impl.1} parent=1 // pred_fallthru
      _
    // Predicated region
    $region6: #{_forward_impl.1} parent=1 // pred_check
      _
    $region7: #{_forward_impl.1} parent=1 // pred_check_branch
      %28 = sbr.rel (0) target = $region9
    $region8: #{_forward_impl.1} parent=1 // pred_region
      %s30 = ssub.s32 512, 512
      %31 = vsyncadd [#allocation5], %s30
      %s32 = sshll.u32 [#allocation4], 4
      %s33 = int_to_ptr.vmem [resolvable:$true] %s32
      %38 = dma.hbm_to_vmem [thread:$0]  %s1, 512, %s33, [#allocation5], 128, 128, 8
    $region9: #{_forward_impl.1} parent=1 // pred_fallthru
      _
    // Predicated region
    $region10: #{_forward_impl.1} parent=1 // pred_check
      _
    $region11: #{_forward_impl.1} parent=1 // pred_check_branch
      %40 = sbr.rel (0) target = $region13
    $region12: #{_forward_impl.1} parent=1 // pred_region
      _
    $region13: #{_forward_impl.1} parent=1 // pred_fallthru
      _
    // Predicated region
    $region14: #{_forward_impl.1} parent=1 // pred_check
      _
    $region15: #{_forward_impl.1} parent=1 // pred_check_branch
      %42 = sbr.rel (0) target = $region17
    $region16: #{_forward_impl.1} parent=1 // pred_region
      %s44 = ssub.s32 2048, 2048
      %45 = vsyncadd [#allocation5], %s44
      %s46 = sshll.u32 [#allocation6], 4
      %s47 = int_to_ptr.vmem [resolvable:$true] %s46
      %52 = dma.hbm_to_vmem [thread:$0]  %s3, 2048, %s47, [#allocation5], 64, 64, 4
    $region17: #{_forward_impl.1} parent=1 // pred_fallthru
      _
    // Predicated region
    $region18: #{_forward_impl.1} parent=1 // pred_check
      _
    $region19: #{_forward_impl.1} parent=1 // pred_check_branch
      %54 = sbr.rel (0) target = $region21
    $region20: #{_forward_impl.1} parent=1 // pred_region
      _
    $region21: #{_forward_impl.1} parent=1 // pred_fallthru
      _
    // Predicated region
    $region22: #{_forward_impl.1} parent=1 // pred_check
      _
    $region23: #{_forward_impl.1} parent=1 // pred_check_branch
      %56 = sbr.rel (0) target = $region25
    $region24: #{_forward_impl.1} parent=1 // pred_region
      _
    $region25: #{_forward_impl.1} parent=1 // pred_fallthru
      _
    // Predicated region
    $region26: #{_forward_impl.1} parent=1 // pred_check
      _
    $region27: #{_forward_impl.1} parent=1 // pred_check_branch
      %58 = sbr.rel (0) target = $region29
    $region28: #{_forward_impl.1} parent=1 // pred_region
      _
    $region29: #{_forward_impl.1} parent=1 // pred_fallthru
      _
    // Predicated region
    $region30: #{_forward_impl.1} parent=1 // pred_check
      _
    $region31: #{_forward_impl.1} parent=1 // pred_check_branch
      %60 = sbr.rel (0) target = $region33
    $region32: #{_forward_impl.1} parent=1 // pred_region
      _
    $region33: #{_forward_impl.1} parent=1 // pred_fallthru
      _
    // Predicated region
    $region34: #{_forward_impl.1} parent=1 // pred_check
      _
    $region35: #{_forward_impl.1} parent=1 // pred_check_branch
      %62 = sbr.rel (0) target = $region37
    $region36: #{_forward_impl.1} parent=1 // pred_region
      %s64 = ssub.s32 16, 16
      %65 = vsyncadd [#allocation8], %s64
      %s67 = sshll.u32 [#allocation7], 4
      %s68 = int_to_ptr.vmem [resolvable:$true] %s67
      %70 = dma.hbm_to_vmem [thread:$0]  %s8, 16, %s68, [#allocation8]
    $region37: #{_forward_impl.1} parent=1 // pred_fallthru
      _
    // Predicated region
    $region38: #{_forward_impl.1} parent=1 // pred_check
      _
    $region39: #{_forward_impl.1} parent=1 // pred_check_branch
      %72 = sbr.rel (0) target = $region41
    $region40: #{_forward_impl.1} parent=1 // pred_region
      %73 = dma.done [#allocation3], 128
    $region41: #{_forward_impl.1} parent=1 // pred_fallthru
      _
    // Predicated region
    $region42: #{_forward_impl.1} parent=1 // pred_check
      _
    $region43: #{_forward_impl.1} parent=1 // pred_check_branch
      %75 = sbr.rel (0) target = $region45
    $region44: #{_forward_impl.1} parent=1 // pred_region
      %76 = dma.done [#allocation5], 512
    $region45: #{_forward_impl.1} parent=1 // pred_fallthru
      _
    // Predicated region
    $region46: #{_forward_impl.1} parent=1 // pred_check
      _
    $region47: #{_forward_impl.1} parent=1 // pred_check_branch
      %78 = sbr.rel (0) target = $region49
    $region48: #{_forward_impl.1} parent=1 // pred_region
      %79 = dma.done [#allocation5], 2048
    $region49: #{_forward_impl.1} parent=1 // pred_fallthru
      _
    // Predicated region
    $region50: #{_forward_impl.1} parent=1 // pred_check
      _
    $region51: #{_forward_impl.1} parent=1 // pred_check_branch
      %81 = sbr.rel (0) target = $region53
    $region52: #{_forward_impl.1} parent=1 // pred_region
      %82 = dma.done [#allocation8], 16
    $region53: #{_forward_impl.1} parent=1 // pred_fallthru
      _
    %v84 = vld [vmem:[#allocation2] sm:$0xff]
    %v85 = vpack.c.bf16 %v84, %v84
    %v86 = vld [vmem:[#allocation4] sm:$0xff]
    %v87 = vld [vmem:[#allocation4 + $0x8] sm:$0xff]
    %v88 = vld [vmem:[#allocation4 + $0x10] sm:$0xff]
    %v89 = vld [vmem:[#allocation4 + $0x18] sm:$0xff]
    %v90 = vld [vmem:[%s2] sm:$0x3]
    %v92 = vlaneseq
    %v93 = vshrl.u32 %v92, 7
    %v94 = vsub.s32 0, %v93
    %v95 = vrot.slane %v90, %v94
    %v96 = vlaneseq
    %v97 = vshrl.u32 %v96, 7
    %v98 = vsub.s32 1, %v97
    %v99 = vrot.slane %v90, %v98
    %v106 = vunpack.c.l.b16 %v86
    %v107 = vunpack.c.h.b16 %v86
    %v108 = vunpack.c.l.b16 %v87
    %v109 = vunpack.c.h.b16 %v87
    %v110 = vunpack.c.l.b16 %v88
    %v111 = vunpack.c.h.b16 %v88
    %v112 = vunpack.c.l.b16 %v89
    %v113 = vunpack.c.h.b16 %v89
    %v114 = vpack.c.b16 %v108, %v106
    %v115 = vpack.c.b16 %v109, %v107
    %v116 = vpack.c.b16 %v112, %v110
    %v117 = vpack.c.b16 %v113, %v111
    %vm122 = vcmask 261120
    %v124 = vsel %vm122, %v85, 0
    %126 = vmatprep.subr.bf16.mxu0 %v115
    %127 = vmatpush1.bf16.msra.mxu0 %v114
    %128 = vmatprep.subr.bf16.mxu0 %v117
    %129 = vmatpush1.bf16.msra.mxu0 %v116
    %130 = vmatprep.subr.bf16.mxu0 0
    %131 = vmatpush1.bf16.msra.mxu0 0
    %132 = vmatprep.subr.bf16.mxu0 0
    %133 = vmatpush1.bf16.msra.mxu0 0
    %134 = vmatprep.subr.bf16.mxu0 0
    %135 = vmatpush1.bf16.msra.mxu0 0
    %136 = vmatprep.subr.bf16.mxu0 0
    %137 = vmatpush1.bf16.msra.mxu0 0
    %138 = vmatprep.subr.bf16.mxu0 0
    %139 = vmatpush1.bf16.msra.mxu0 0
    %140 = vmatprep.subr.bf16.mxu0 0
    %141 = vmatpush1.bf16.msra.mxu0 0
    %142 = vmatprep.subr.bf16.mxu0 0
    %143 = vmatpush1.bf16.msra.mxu0 0
    %144 = vmatprep.subr.bf16.mxu0 0
    %145 = vmatpush1.bf16.msra.mxu0 0
    %146 = vmatprep.subr.bf16.mxu0 0
    %147 = vmatpush1.bf16.msra.mxu0 0
    %148 = vmatprep.subr.bf16.mxu0 0
    %149 = vmatpush1.bf16.msra.mxu0 0
    %150 = vmatprep.subr.bf16.mxu0 0
    %151 = vmatpush1.bf16.msra.mxu0 0
    %152 = vmatprep.subr.bf16.mxu0 0
    %153 = vmatpush1.bf16.msra.mxu0 0
    %154 = vmatprep.subr.bf16.mxu0 0
    %155 = vmatpush1.bf16.msra.mxu0 0
    %156 = vmatprep.subr.bf16.mxu0 0
    %157 = vmatpush1.bf16.msra.mxu0 0
    %158 = vmatprep.mubr.bf16.mxu0 0
    %159 = vmatmul.mubr.bf16.gmra.mrb[0].mxu0 %v124
    %v160 = vpop.f32.mrb[0].mxu0
    %v161 = vadd.f32 %v95, %v160
    %v162 = vpop.f32.mrb[0].mxu0
    %v163 = vadd.f32 %v99, %v162
    %v164 = vpop.f32.mrb[0].mxu0
    %v165 = vpop.f32.mrb[0].mxu0
    %166 = vdwg.mxu0
    %v167 = vmax.f32 %v161, 0.0
    %v168 = vmax.f32 %v163, 0.0
    %v169 = vpack.c.bf16 %v167, %v167
    %v170 = vpack.c.bf16 %v168, %v168
    %v171 = vld [vmem:[#allocation6] sm:$0xf]
    %v172 = vld [vmem:[#allocation6 + $0x4] sm:$0xf]
    %v173 = vld [vmem:[#allocation6 + $0x8] sm:$0xf]
    %v174 = vld [vmem:[#allocation6 + $0xc] sm:$0xf]
    %v175 = vld [vmem:[#allocation6 + $0x10] sm:$0xf]
    %v176 = vld [vmem:[#allocation6 + $0x14] sm:$0xf]
    %v177 = vld [vmem:[#allocation6 + $0x18] sm:$0xf]
    %v178 = vld [vmem:[#allocation6 + $0x1c] sm:$0xf]
    %v179 = vld [vmem:[#allocation6 + $0x20] sm:$0xf]
    %v180 = vld [vmem:[#allocation6 + $0x24] sm:$0xf]
    %v181 = vld [vmem:[#allocation6 + $0x28] sm:$0xf]
    %v182 = vld [vmem:[#allocation6 + $0x2c] sm:$0xf]
    %v183 = vld [vmem:[#allocation6 + $0x30] sm:$0xf]
    %v184 = vld [vmem:[#allocation6 + $0x34] sm:$0xf]
    %v185 = vld [vmem:[#allocation6 + $0x38] sm:$0xf]
    %v186 = vld [vmem:[#allocation6 + $0x3c] sm:$0xf]
    %v187 = vld [vmem:[#allocation6 + $0x40] sm:$0xf]
    %v188 = vld [vmem:[#allocation6 + $0x44] sm:$0xf]
    %v189 = vld [vmem:[#allocation6 + $0x48] sm:$0xf]
    %v190 = vld [vmem:[#allocation6 + $0x4c] sm:$0xf]
    %v191 = vld [vmem:[#allocation6 + $0x50] sm:$0xf]
    %v192 = vld [vmem:[#allocation6 + $0x54] sm:$0xf]
    %v193 = vld [vmem:[#allocation6 + $0x58] sm:$0xf]
    %v194 = vld [vmem:[#allocation6 + $0x5c] sm:$0xf]
    %v195 = vld [vmem:[#allocation6 + $0x60] sm:$0xf]
    %v196 = vld [vmem:[#allocation6 + $0x64] sm:$0xf]
    %v197 = vld [vmem:[#allocation6 + $0x68] sm:$0xf]
    %v198 = vld [vmem:[#allocation6 + $0x6c] sm:$0xf]
    %v199 = vld [vmem:[#allocation6 + $0x70] sm:$0xf]
    %v200 = vld [vmem:[#allocation6 + $0x74] sm:$0xf]
    %v201 = vld [vmem:[#allocation6 + $0x78] sm:$0xf]
    %v202 = vld [vmem:[#allocation6 + $0x7c] sm:$0xf]
    %v203 = vld [vmem:[%s4] sm:$0x1]
    %v205 = vlaneseq
    %v206 = vshrl.u32 %v205, 7
    %v207 = vsub.s32 0, %v206
    %v208 = vrot.slane %v203, %v207
    %v242 = vunpack.c.l.b16 %v171
    %v243 = vunpack.c.l.b16 %v172
    %v244 = vunpack.c.l.b16 %v173
    %v245 = vunpack.c.l.b16 %v174
    %v246 = vunpack.c.l.b16 %v175
    %v247 = vunpack.c.l.b16 %v176
    %v248 = vunpack.c.l.b16 %v177
    %v249 = vunpack.c.l.b16 %v178
    %v250 = vunpack.c.l.b16 %v179
    %v251 = vunpack.c.l.b16 %v180
    %v252 = vunpack.c.l.b16 %v181
    %v253 = vunpack.c.l.b16 %v182
    %v254 = vunpack.c.l.b16 %v183
    %v255 = vunpack.c.l.b16 %v184
    %v256 = vunpack.c.l.b16 %v185
    %v257 = vunpack.c.l.b16 %v186
    %v258 = vunpack.c.l.b16 %v187
    %v259 = vunpack.c.l.b16 %v188
    %v260 = vunpack.c.l.b16 %v189
    %v261 = vunpack.c.l.b16 %v190
    %v262 = vunpack.c.l.b16 %v191
    %v263 = vunpack.c.l.b16 %v192
    %v264 = vunpack.c.l.b16 %v193
    %v265 = vunpack.c.l.b16 %v194
    %v266 = vunpack.c.l.b16 %v195
    %v267 = vunpack.c.l.b16 %v196
    %v268 = vunpack.c.l.b16 %v197
    %v269 = vunpack.c.l.b16 %v198
    %v270 = vunpack.c.l.b16 %v199
    %v271 = vunpack.c.l.b16 %v200
    %v272 = vunpack.c.l.b16 %v201
    %v273 = vunpack.c.l.b16 %v202
    %v274 = vpack.c.b16 %v243, %v242
    %v275 = vpack.c.b16 %v245, %v244
    %v276 = vpack.c.b16 %v247, %v246
    %v277 = vpack.c.b16 %v249, %v248
    %v278 = vpack.c.b16 %v251, %v250
    %v279 = vpack.c.b16 %v253, %v252
    %v280 = vpack.c.b16 %v255, %v254
    %v281 = vpack.c.b16 %v257, %v256
    %v282 = vpack.c.b16 %v259, %v258
    %v283 = vpack.c.b16 %v261, %v260
    %v284 = vpack.c.b16 %v263, %v262
    %v285 = vpack.c.b16 %v265, %v264
    %v286 = vpack.c.b16 %v267, %v266
    %v287 = vpack.c.b16 %v269, %v268
    %v288 = vpack.c.b16 %v271, %v270
    %v289 = vpack.c.b16 %v273, %v272
    %306 = vmatprep.subr.bf16.mxu0 0
    %307 = vmatpush1.bf16.msra.mxu0 %v274
    %308 = vmatprep.subr.bf16.mxu0 0
    %309 = vmatpush1.bf16.msra.mxu0 %v275
    %310 = vmatprep.subr.bf16.mxu0 0
    %311 = vmatpush1.bf16.msra.mxu0 %v276
    %312 = vmatprep.subr.bf16.mxu0 0
    %313 = vmatpush1.bf16.msra.mxu0 %v277
    %314 = vmatprep.subr.bf16.mxu0 0
    %315 = vmatpush1.bf16.msra.mxu0 %v278
    %316 = vmatprep.subr.bf16.mxu0 0
    %317 = vmatpush1.bf16.msra.mxu0 %v279
    %318 = vmatprep.subr.bf16.mxu0 0
    %319 = vmatpush1.bf16.msra.mxu0 %v280
    %320 = vmatprep.subr.bf16.mxu0 0
    %321 = vmatpush1.bf16.msra.mxu0 %v281
    %322 = vmatprep.subr.bf16.mxu0 0
    %323 = vmatpush1.bf16.msra.mxu0 %v282
    %324 = vmatprep.subr.bf16.mxu0 0
    %325 = vmatpush1.bf16.msra.mxu0 %v283
    %326 = vmatprep.subr.bf16.mxu0 0
    %327 = vmatpush1.bf16.msra.mxu0 %v284
    %328 = vmatprep.subr.bf16.mxu0 0
    %329 = vmatpush1.bf16.msra.mxu0 %v285
    %330 = vmatprep.subr.bf16.mxu0 0
    %331 = vmatpush1.bf16.msra.mxu0 %v286
    %332 = vmatprep.subr.bf16.mxu0 0
    %333 = vmatpush1.bf16.msra.mxu0 %v287
    %334 = vmatprep.subr.bf16.mxu0 0
    %335 = vmatpush1.bf16.msra.mxu0 %v288
    %336 = vmatprep.subr.bf16.mxu0 0
    %337 = vmatpush1.bf16.msra.mxu0 %v289
    %338 = vmatprep.mubr.bf16.mxu0 %v170
    %339 = vmatmul.mubr.bf16.gmra.mrb[0].mxu0 %v169
    %v340 = vpop.f32.mrb[0].mxu0
    %v341 = vadd.f32 %v208, %v340
    %v342 = vpop.f32.mrb[0].mxu0
    %v343 = vpop.f32.mrb[0].mxu0
    %v344 = vpop.f32.mrb[0].mxu0
    %345 = vdwg.mxu0
    %v346 = vmax.f32 %v341, 0.0
    %v347 = vpack.c.bf16 %v346, %v346
    %v348 = vld [vmem:[%s5] sm:$0xff]
    %v349 = vld [vmem:[%s5 + $0x8] sm:$0xf]
    %v350 = vld [vmem:[%s5 + $0xc] sm:$0xff]
    %v351 = vld [vmem:[%s5 + $0x14] sm:$0xf]
    %v352 = vld [vmem:[%s5 + $0x18] sm:$0xff]
    %v353 = vld [vmem:[%s5 + $0x20] sm:$0xf]
    %v354 = vld [vmem:[%s5 + $0x24] sm:$0xff]
    %v355 = vld [vmem:[%s5 + $0x2c] sm:$0xf]
    %v356 = vld [vmem:[%s5 + $0x30] sm:$0xff]
    %v357 = vld [vmem:[%s5 + $0x38] sm:$0xf]
    %v358 = vld [vmem:[%s5 + $0x3c] sm:$0xff]
    %v359 = vld [vmem:[%s5 + $0x44] sm:$0xf]
    %v360 = vld [vmem:[%s5 + $0x48] sm:$0xff]
    %v361 = vld [vmem:[%s5 + $0x50] sm:$0xf]
    %v362 = vld [vmem:[%s5 + $0x54] sm:$0xff]
    %v363 = vld [vmem:[%s5 + $0x5c] sm:$0xf]
    %v364 = vld [vmem:[%s5 + $0x60] sm:$0xff]
    %v365 = vld [vmem:[%s5 + $0x68] sm:$0xf]
    %v366 = vld [vmem:[%s5 + $0x6c] sm:$0xff]
    %v367 = vld [vmem:[%s5 + $0x74] sm:$0xf]
    %v368 = vld [vmem:[%s5 + $0x78] sm:$0xff]
    %v369 = vld [vmem:[%s5 + $0x80] sm:$0xf]
    %v370 = vld [vmem:[%s5 + $0x84] sm:$0xff]
    %v371 = vld [vmem:[%s5 + $0x8c] sm:$0xf]
    %v372 = vld [vmem:[%s5 + $0x90] sm:$0xff]
    %v373 = vld [vmem:[%s5 + $0x98] sm:$0xf]
    %v374 = vld [vmem:[%s5 + $0x9c] sm:$0xff]
    %v375 = vld [vmem:[%s5 + $0xa4] sm:$0xf]
    %v376 = vld [vmem:[%s5 + $0xa8] sm:$0xff]
    %v377 = vld [vmem:[%s5 + $0xb0] sm:$0xf]
    %v378 = vld [vmem:[%s5 + $0xb4] sm:$0xff]
    %v379 = vld [vmem:[%s5 + $0xbc] sm:$0xf]
    %v380 = vld [vmem:[%s6] sm:$0x7]
    %v382 = vlaneseq
    %v383 = vshrl.u32 %v382, 7
    %v384 = vsub.s32 0, %v383
    %v385 = vrot.slane %v380, %v384
    %v386 = vlaneseq
    %v387 = vshrl.u32 %v386, 7
    %v388 = vsub.s32 1, %v387
    %v389 = vrot.slane %v380, %v388
    %v390 = vlaneseq
    %v391 = vshrl.u32 %v390, 7
    %v392 = vsub.s32 2, %v391
    %v393 = vrot.slane %v380, %v392
    %v429 = vunpack.c.l.b16 %v348
    %v430 = vunpack.c.h.b16 %v348
    %v431 = vunpack.c.l.b16 %v349
    %v432 = vunpack.c.l.b16 %v350
    %v433 = vunpack.c.h.b16 %v350
    %v434 = vunpack.c.l.b16 %v351
    %v435 = vunpack.c.l.b16 %v352
    %v436 = vunpack.c.h.b16 %v352
    %v437 = vunpack.c.l.b16 %v353
    %v438 = vunpack.c.l.b16 %v354
    %v439 = vunpack.c.h.b16 %v354
    %v440 = vunpack.c.l.b16 %v355
    %v441 = vunpack.c.l.b16 %v356
    %v442 = vunpack.c.h.b16 %v356
    %v443 = vunpack.c.l.b16 %v357
    %v444 = vunpack.c.l.b16 %v358
    %v445 = vunpack.c.h.b16 %v358
    %v446 = vunpack.c.l.b16 %v359
    %v447 = vunpack.c.l.b16 %v360
    %v448 = vunpack.c.h.b16 %v360
    %v449 = vunpack.c.l.b16 %v361
    %v450 = vunpack.c.l.b16 %v362
    %v451 = vunpack.c.h.b16 %v362
    %v452 = vunpack.c.l.b16 %v363
    %v453 = vunpack.c.l.b16 %v364
    %v454 = vunpack.c.h.b16 %v364
    %v455 = vunpack.c.l.b16 %v365
    %v456 = vunpack.c.l.b16 %v366
    %v457 = vunpack.c.h.b16 %v366
    %v458 = vunpack.c.l.b16 %v367
    %v459 = vunpack.c.l.b16 %v368
    %v460 = vunpack.c.h.b16 %v368
    %v461 = vunpack.c.l.b16 %v369
    %v462 = vunpack.c.l.b16 %v370
    %v463 = vunpack.c.h.b16 %v370
    %v464 = vunpack.c.l.b16 %v371
    %v465 = vunpack.c.l.b16 %v372
    %v466 = vunpack.c.h.b16 %v372
    %v467 = vunpack.c.l.b16 %v373
    %v468 = vunpack.c.l.b16 %v374
    %v469 = vunpack.c.h.b16 %v374
    %v470 = vunpack.c.l.b16 %v375
    %v471 = vunpack.c.l.b16 %v376
    %v472 = vunpack.c.h.b16 %v376
    %v473 = vunpack.c.l.b16 %v377
    %v474 = vunpack.c.l.b16 %v378
    %v475 = vunpack.c.h.b16 %v378
    %v476 = vunpack.c.l.b16 %v379
    %v477 = vpack.c.b16 %v432, %v429
    %v478 = vpack.c.b16 %v433, %v430
    %v479 = vpack.c.b16 %v434, %v431
    %v480 = vpack.c.b16 %v438, %v435
    %v481 = vpack.c.b16 %v439, %v436
    %v482 = vpack.c.b16 %v440, %v437
    %v483 = vpack.c.b16 %v444, %v441
    %v484 = vpack.c.b16 %v445, %v442
    %v485 = vpack.c.b16 %v446, %v443
    %v486 = vpack.c.b16 %v450, %v447
    %v487 = vpack.c.b16 %v451, %v448
    %v488 = vpack.c.b16 %v452, %v449
    %v489 = vpack.c.b16 %v456, %v453
    %v490 = vpack.c.b16 %v457, %v454
    %v491 = vpack.c.b16 %v458, %v455
    %v492 = vpack.c.b16 %v462, %v459
    %v493 = vpack.c.b16 %v463, %v460
    %v494 = vpack.c.b16 %v464, %v461
    %v495 = vpack.c.b16 %v468, %v465
    %v496 = vpack.c.b16 %v469, %v466
    %v497 = vpack.c.b16 %v470, %v467
    %v498 = vpack.c.b16 %v474, %v471
    %v499 = vpack.c.b16 %v475, %v472
    %v500 = vpack.c.b16 %v476, %v473
    %525 = vmatprep.subr.bf16.mxu0 %v478
    %526 = vmatpush1.bf16.msra.mxu0 %v477
    %527 = vmatprep.subr.bf16.mxu0 %v481
    %528 = vmatpush1.bf16.msra.mxu0 %v480
    %529 = vmatprep.subr.bf16.mxu0 %v484
    %530 = vmatpush1.bf16.msra.mxu0 %v483
    %531 = vmatprep.subr.bf16.mxu0 %v487
    %532 = vmatpush1.bf16.msra.mxu0 %v486
    %533 = vmatprep.subr.bf16.mxu0 %v490
    %534 = vmatpush1.bf16.msra.mxu0 %v489
    %535 = vmatprep.subr.bf16.mxu0 %v493
    %536 = vmatpush1.bf16.msra.mxu0 %v492
    %537 = vmatprep.subr.bf16.mxu0 %v496
    %538 = vmatpush1.bf16.msra.mxu0 %v495
    %539 = vmatprep.subr.bf16.mxu0 %v499
    %540 = vmatpush1.bf16.msra.mxu0 %v498
    %541 = vmatprep.subr.bf16.mxu0 0
    %542 = vmatpush1.bf16.msra.mxu0 0
    %543 = vmatprep.subr.bf16.mxu0 0
    %544 = vmatpush1.bf16.msra.mxu0 0
    %545 = vmatprep.subr.bf16.mxu0 0
    %546 = vmatpush1.bf16.msra.mxu0 0
    %547 = vmatprep.subr.bf16.mxu0 0
    %548 = vmatpush1.bf16.msra.mxu0 0
    %549 = vmatprep.subr.bf16.mxu0 0
    %550 = vmatpush1.bf16.msra.mxu0 0
    %551 = vmatprep.subr.bf16.mxu0 0
    %552 = vmatpush1.bf16.msra.mxu0 0
    %553 = vmatprep.subr.bf16.mxu0 0
    %554 = vmatpush1.bf16.msra.mxu0 0
    %555 = vmatprep.subr.bf16.mxu0 0
    %556 = vmatpush1.bf16.msra.mxu0 0
    %557 = vmatprep.mubr.bf16.mxu0 0
    %558 = vmatmul.mubr.bf16.gmra.mrb[0].mxu0 %v347
    %v559 = vpop.f32.mrb[0].mxu0
    %v560 = vadd.f32 %v385, %v559
    %v561 = vpop.f32.mrb[0].mxu0
    %v562 = vadd.f32 %v389, %v561
    %v563 = vpop.f32.mrb[0].mxu0
    %v564 = vpop.f32.mrb[0].mxu0
    %565 = vdwg.mxu0
    %566 = vmatprep.subr.bf16.mxu0 0
    %567 = vmatpush1.bf16.msra.mxu0 %v479
    %568 = vmatprep.subr.bf16.mxu0 0
    %569 = vmatpush1.bf16.msra.mxu0 %v482
    %570 = vmatprep.subr.bf16.mxu0 0
    %571 = vmatpush1.bf16.msra.mxu0 %v485
    %572 = vmatprep.subr.bf16.mxu0 0
    %573 = vmatpush1.bf16.msra.mxu0 %v488
    %574 = vmatprep.subr.bf16.mxu0 0
    %575 = vmatpush1.bf16.msra.mxu0 %v491
    %576 = vmatprep.subr.bf16.mxu0 0
    %577 = vmatpush1.bf16.msra.mxu0 %v494
    %578 = vmatprep.subr.bf16.mxu0 0
    %579 = vmatpush1.bf16.msra.mxu0 %v497
    %580 = vmatprep.subr.bf16.mxu0 0
    %581 = vmatpush1.bf16.msra.mxu0 %v500
    %582 = vmatprep.subr.bf16.mxu0 0
    %583 = vmatpush1.bf16.msra.mxu0 0
    %584 = vmatprep.subr.bf16.mxu0 0
    %585 = vmatpush1.bf16.msra.mxu0 0
    %586 = vmatprep.subr.bf16.mxu0 0
    %587 = vmatpush1.bf16.msra.mxu0 0
    %588 = vmatprep.subr.bf16.mxu0 0
    %589 = vmatpush1.bf16.msra.mxu0 0
    %590 = vmatprep.subr.bf16.mxu0 0
    %591 = vmatpush1.bf16.msra.mxu0 0
    %592 = vmatprep.subr.bf16.mxu0 0
    %593 = vmatpush1.bf16.msra.mxu0 0
    %594 = vmatprep.subr.bf16.mxu0 0
    %595 = vmatpush1.bf16.msra.mxu0 0
    %596 = vmatprep.subr.bf16.mxu0 0
    %597 = vmatpush1.bf16.msra.mxu0 0
    %598 = vmatprep.mubr.bf16.mxu0 0
    %599 = vmatmul.mubr.bf16.gmra.mrb[0].mxu0 %v347
    %v600 = vpop.f32.mrb[0].mxu0
    %v601 = vadd.f32 %v393, %v600
    %v602 = vpop.f32.mrb[0].mxu0
    %v603 = vpop.f32.mrb[0].mxu0
    %v604 = vpop.f32.mrb[0].mxu0
    %605 = vdwg.mxu0
    %v606 = vmax.f32 %v560, 0.0
    %v607 = vmax.f32 %v562, 0.0
    %v608 = vmax.f32 %v601, 0.0
    %v609 = vpack.c.bf16 %v606, %v606
    %v610 = vpack.c.bf16 %v607, %v607
    %v611 = vpack.c.bf16 %v608, %v608
    %v612 = vld [vmem:[%s7] sm:$0xf]
    %v613 = vld [vmem:[%s7 + $0x4] sm:$0xf]
    %v614 = vld [vmem:[%s7 + $0x8] sm:$0xf]
    %v615 = vld [vmem:[%s7 + $0xc] sm:$0xf]
    %v616 = vld [vmem:[%s7 + $0x10] sm:$0xf]
    %v617 = vld [vmem:[%s7 + $0x14] sm:$0xf]
    %v618 = vld [vmem:[%s7 + $0x18] sm:$0xf]
    %v619 = vld [vmem:[%s7 + $0x1c] sm:$0xf]
    %v620 = vld [vmem:[%s7 + $0x20] sm:$0xf]
    %v621 = vld [vmem:[%s7 + $0x24] sm:$0xf]
    %v622 = vld [vmem:[%s7 + $0x28] sm:$0xf]
    %v623 = vld [vmem:[%s7 + $0x2c] sm:$0xf]
    %v624 = vld [vmem:[%s7 + $0x30] sm:$0xf]
    %v625 = vld [vmem:[%s7 + $0x34] sm:$0xf]
    %v626 = vld [vmem:[%s7 + $0x38] sm:$0xf]
    %v627 = vld [vmem:[%s7 + $0x3c] sm:$0xf]
    %v628 = vld [vmem:[%s7 + $0x40] sm:$0xf]
    %v629 = vld [vmem:[%s7 + $0x44] sm:$0xf]
    %v630 = vld [vmem:[%s7 + $0x48] sm:$0xf]
    %v631 = vld [vmem:[%s7 + $0x4c] sm:$0xf]
    %v632 = vld [vmem:[%s7 + $0x50] sm:$0xf]
    %v633 = vld [vmem:[%s7 + $0x54] sm:$0xf]
    %v634 = vld [vmem:[%s7 + $0x58] sm:$0xf]
    %v635 = vld [vmem:[%s7 + $0x5c] sm:$0xf]
    %v636 = vld [vmem:[%s7 + $0x60] sm:$0xf]
    %v637 = vld [vmem:[%s7 + $0x64] sm:$0xf]
    %v638 = vld [vmem:[%s7 + $0x68] sm:$0xf]
    %v639 = vld [vmem:[%s7 + $0x6c] sm:$0xf]
    %v640 = vld [vmem:[%s7 + $0x70] sm:$0xf]
    %v641 = vld [vmem:[%s7 + $0x74] sm:$0xf]
    %v642 = vld [vmem:[%s7 + $0x78] sm:$0xf]
    %v643 = vld [vmem:[%s7 + $0x7c] sm:$0xf]
    %v644 = vld [vmem:[%s7 + $0x80] sm:$0xf]
    %v645 = vld [vmem:[%s7 + $0x84] sm:$0xf]
    %v646 = vld [vmem:[%s7 + $0x88] sm:$0xf]
    %v647 = vld [vmem:[%s7 + $0x8c] sm:$0xf]
    %v648 = vld [vmem:[%s7 + $0x90] sm:$0xf]
    %v649 = vld [vmem:[%s7 + $0x94] sm:$0xf]
    %v650 = vld [vmem:[%s7 + $0x98] sm:$0xf]
    %v651 = vld [vmem:[%s7 + $0x9c] sm:$0xf]
    %v652 = vld [vmem:[#allocation7] sm:$0x1]
    %v654 = vlaneseq
    %v655 = vshrl.u32 %v654, 7
    %v656 = vsub.s32 0, %v655
    %v657 = vrot.slane %v652, %v656
    %v699 = vunpack.c.l.b16 %v612
    %v700 = vunpack.c.l.b16 %v613
    %v701 = vunpack.c.l.b16 %v614
    %v702 = vunpack.c.l.b16 %v615
    %v703 = vunpack.c.l.b16 %v616
    %v704 = vunpack.c.l.b16 %v617
    %v705 = vunpack.c.l.b16 %v618
    %v706 = vunpack.c.l.b16 %v619
    %v707 = vunpack.c.l.b16 %v620
    %v708 = vunpack.c.l.b16 %v621
    %v709 = vunpack.c.l.b16 %v622
    %v710 = vunpack.c.l.b16 %v623
    %v711 = vunpack.c.l.b16 %v624
    %v712 = vunpack.c.l.b16 %v625
    %v713 = vunpack.c.l.b16 %v626
    %v714 = vunpack.c.l.b16 %v627
    %v715 = vunpack.c.l.b16 %v628
    %v716 = vunpack.c.l.b16 %v629
    %v717 = vunpack.c.l.b16 %v630
    %v718 = vunpack.c.l.b16 %v631
    %v719 = vunpack.c.l.b16 %v632
    %v720 = vunpack.c.l.b16 %v633
    %v721 = vunpack.c.l.b16 %v634
    %v722 = vunpack.c.l.b16 %v635
    %v723 = vunpack.c.l.b16 %v636
    %v724 = vunpack.c.l.b16 %v637
    %v725 = vunpack.c.l.b16 %v638
    %v726 = vunpack.c.l.b16 %v639
    %v727 = vunpack.c.l.b16 %v640
    %v728 = vunpack.c.l.b16 %v641
    %v729 = vunpack.c.l.b16 %v642
    %v730 = vunpack.c.l.b16 %v643
    %v731 = vunpack.c.l.b16 %v644
    %v732 = vunpack.c.l.b16 %v645
    %v733 = vunpack.c.l.b16 %v646
    %v734 = vunpack.c.l.b16 %v647
    %v735 = vunpack.c.l.b16 %v648
    %v736 = vunpack.c.l.b16 %v649
    %v737 = vunpack.c.l.b16 %v650
    %v738 = vunpack.c.l.b16 %v651
    %v739 = vpack.c.b16 %v700, %v699
    %v740 = vpack.c.b16 %v702, %v701
    %v741 = vpack.c.b16 %v704, %v703
    %v742 = vpack.c.b16 %v706, %v705
    %v743 = vpack.c.b16 %v708, %v707
    %v744 = vpack.c.b16 %v710, %v709
    %v745 = vpack.c.b16 %v712, %v711
    %v746 = vpack.c.b16 %v714, %v713
    %v747 = vpack.c.b16 %v716, %v715
    %v748 = vpack.c.b16 %v718, %v717
    %v749 = vpack.c.b16 %v720, %v719
    %v750 = vpack.c.b16 %v722, %v721
    %v751 = vpack.c.b16 %v724, %v723
    %v752 = vpack.c.b16 %v726, %v725
    %v753 = vpack.c.b16 %v728, %v727
    %v754 = vpack.c.b16 %v730, %v729
    %v755 = vpack.c.b16 %v732, %v731
    %v756 = vpack.c.b16 %v734, %v733
    %v757 = vpack.c.b16 %v736, %v735
    %v758 = vpack.c.b16 %v738, %v737
    %vm779 = vcmask 523264
    %v781 = vsel %vm779, %v611, 0
    %783 = vmatprep.subr.bf16.mxu0 0
    %784 = vmatpush1.bf16.msra.mxu0 %v739
    %785 = vmatprep.subr.bf16.mxu0 0
    %786 = vmatpush1.bf16.msra.mxu0 %v740
    %787 = vmatprep.subr.bf16.mxu0 0
    %788 = vmatpush1.bf16.msra.mxu0 %v741
    %789 = vmatprep.subr.bf16.mxu0 0
    %790 = vmatpush1.bf16.msra.mxu0 %v742
    %791 = vmatprep.subr.bf16.mxu0 0
    %792 = vmatpush1.bf16.msra.mxu0 %v743
    %793 = vmatprep.subr.bf16.mxu0 0
    %794 = vmatpush1.bf16.msra.mxu0 %v744
    %795 = vmatprep.subr.bf16.mxu0 0
    %796 = vmatpush1.bf16.msra.mxu0 %v745
    %797 = vmatprep.subr.bf16.mxu0 0
    %798 = vmatpush1.bf16.msra.mxu0 %v746
    %799 = vmatprep.subr.bf16.mxu0 0
    %800 = vmatpush1.bf16.msra.mxu0 %v747
    %801 = vmatprep.subr.bf16.mxu0 0
    %802 = vmatpush1.bf16.msra.mxu0 %v748
    %803 = vmatprep.subr.bf16.mxu0 0
    %804 = vmatpush1.bf16.msra.mxu0 %v749
    %805 = vmatprep.subr.bf16.mxu0 0
    %806 = vmatpush1.bf16.msra.mxu0 %v750
    %807 = vmatprep.subr.bf16.mxu0 0
    %808 = vmatpush1.bf16.msra.mxu0 %v751
    %809 = vmatprep.subr.bf16.mxu0 0
    %810 = vmatpush1.bf16.msra.mxu0 %v752
    %811 = vmatprep.subr.bf16.mxu0 0
    %812 = vmatpush1.bf16.msra.mxu0 %v753
    %813 = vmatprep.subr.bf16.mxu0 0
    %814 = vmatpush1.bf16.msra.mxu0 %v754
    %815 = vmatprep.mubr.bf16.mxu0 %v610
    %816 = vmatmul.mubr.bf16.gmra.mrb[0].mxu0 %v609
    %v817 = vpop.f32.mrb[0].mxu0
    %v818 = vadd.f32 %v657, %v817
    %v819 = vpop.f32.mrb[0].mxu0
    %v820 = vpop.f32.mrb[0].mxu0
    %v821 = vpop.f32.mrb[0].mxu0
    %822 = vdwg.mxu0
    %823 = vmatprep.subr.bf16.mxu0 0
    %824 = vmatpush1.bf16.msra.mxu0 %v755
    %825 = vmatprep.subr.bf16.mxu0 0
    %826 = vmatpush1.bf16.msra.mxu0 %v756
    %827 = vmatprep.subr.bf16.mxu0 0
    %828 = vmatpush1.bf16.msra.mxu0 %v757
    %829 = vmatprep.subr.bf16.mxu0 0
    %830 = vmatpush1.bf16.msra.mxu0 %v758
    %831 = vmatprep.subr.bf16.mxu0 0
    %832 = vmatpush1.bf16.msra.mxu0 0
    %833 = vmatprep.subr.bf16.mxu0 0
    %834 = vmatpush1.bf16.msra.mxu0 0
    %835 = vmatprep.subr.bf16.mxu0 0
    %836 = vmatpush1.bf16.msra.mxu0 0
    %837 = vmatprep.subr.bf16.mxu0 0
    %838 = vmatpush1.bf16.msra.mxu0 0
    %839 = vmatprep.subr.bf16.mxu0 0
    %840 = vmatpush1.bf16.msra.mxu0 0
    %841 = vmatprep.subr.bf16.mxu0 0
    %842 = vmatpush1.bf16.msra.mxu0 0
    %843 = vmatprep.subr.bf16.mxu0 0
    %844 = vmatpush1.bf16.msra.mxu0 0
    %845 = vmatprep.subr.bf16.mxu0 0
    %846 = vmatpush1.bf16.msra.mxu0 0
    %847 = vmatprep.subr.bf16.mxu0 0
    %848 = vmatpush1.bf16.msra.mxu0 0
    %849 = vmatprep.subr.bf16.mxu0 0
    %850 = vmatpush1.bf16.msra.mxu0 0
    %851 = vmatprep.subr.bf16.mxu0 0
    %852 = vmatpush1.bf16.msra.mxu0 0
    %853 = vmatprep.subr.bf16.mxu0 0
    %854 = vmatpush1.bf16.msra.mxu0 0
    %855 = vmatprep.mubr.bf16.mxu0 0
    %856 = vmatmul.mubr.bf16.gmra.mrb[0].mxu0 %v781
    %v857 = vpop.f32.mrb[0].mxu0
    %v858 = vadd.f32 %v818, %v857
    %v859 = vpop.f32.mrb[0].mxu0
    %v860 = vpop.f32.mrb[0].mxu0
    %v861 = vpop.f32.mrb[0].mxu0
    %862 = vdwg.mxu0
    %vm863 = vcmask 564736
    %v864 = vsel %vm863, %v601, -inf
    %865 = vmax.xlane.f32.xlu0 %v864
    %v866 = vpop.xlane.xlu0 %865
    %v867 = vsub.f32 %v601, %v866
    %v868 = vmul.f32 %v867, 1.442695
    %v869 = vpow.pop %v868
    %871 = vrot.lane.b32.xlu0 %v869, 64
    %v872 = vpop.permute.xlu0 %871
    %vm874 = vcmask 39936
    %v875 = vsel %vm874, %v872, 0.0
    %876 = vadd.xlane.f32.xlu0 %v875
    %v877 = vpop.xlane.xlu0 %876
    %v878 = vrcp.pop %v877
    %v879 = vmul.f32 %v869, %v878
    %881 = vrot.lane.b32.xlu0 %v879, 64
    %v882 = vpop.permute.xlu0 %881
    %v884 = vmul.f32 %v858, %v882
    %v885 = vsel %vm874, %v884, 0.0
    %886 = vadd.xlane.f32.xlu0 %v885
    %v887 = vpop.xlane.xlu0 %886
    %889 = vrot.lane.b32.xlu0 %v858, 1
    %v890 = vpop.permute.xlu0 %889
    %892 = vrot.lane.b32.xlu0 %v879, 70
    %v893 = vpop.permute.xlu0 %892
    %vm895 = vcmask 7168
    %v896 = vsel %vm895, %v887, %v890
    %vm897 = vcmask 48128
    %v898 = vsel %vm897, %v896, %v893
    %vm899 = vcmask 89088
    %v900 = vsel %vm899, %v898, 0.0
    %vm901 = vcmask 130048
    %902 = vst.msk [vmem:[%s9] sm:$0xff] %vm901, %v900
    // Predicated region
    $region54: #{_forward_impl.1} parent=1 // pred_check
      _
    $region55: #{_forward_impl.1} parent=1 // pred_check_branch
      %904 = sbr.rel (0) target = $region57
    $region56: #{_forward_impl.1} parent=1 // pred_region
      _
    $region57: #{_forward_impl.1} parent=1 // pred_fallthru
      _
    // Predicated region
    $region58: #{_forward_impl.1} parent=1 // pred_check
      _
    $region59: #{_forward_impl.1} parent=1 // pred_check_branch
      %906 = sbr.rel (0) target = $region61
    $region60: #{_forward_impl.1} parent=1 // pred_region
      _
    $region61: #{_forward_impl.1} parent=1 // pred_fallthru
      _
    %907 = vsyncpa [#allocation3], 1
    %908 = vsyncpa [#allocation5], 1
    %909 = vsyncpa [#allocation8], 1

</llo_original>
